<compile_context>
chip_gen: v7x
topology: tpu7x:2x2x1
jax: 0.10.0
libtpu: 0.0.40
codegen_flags: <defaults>
</compile_context>

<pallas_src>
import functools

import jax
import jax.numpy as jnp
from jax.experimental import pallas as pl
from jax.experimental.pallas import tpu as pltpu


HIDDEN = 128


def _critic_kernel(x_ref, w1_ref, b1_ref, w2_ref, b2_ref, w3_ref, b3_ref,
                   out_ref, *, compute_dtype):
    """Whole Critic forward pass for one batch tile.

    x_ref:   (tb, state_dim)   f32
    w1_ref:  (state_dim, 128)  f32/bf16    b1_ref: (1, 128) f32
    w2_ref:  (128, 128)        f32/bf16    b2_ref: (1, 128) f32
    w3_ref:  (1, 128)          f32  (value-head row, i.e. W3^T)
    b3_ref:  (1, 1)            f32
    out_ref: (tb, 1)           f32
    """
    x = x_ref[...]
    if compute_dtype != jnp.float32:
        x = x.astype(compute_dtype)        # weights were pre-cast in the wrapper

    # Linear1 -> Dropout1 (identity in eval) -> ReLU.  f32 accumulate/bias/ReLU.
    h1 = jnp.dot(x, w1_ref[...], preferred_element_type=jnp.float32) + b1_ref[...]
    h1 = jnp.maximum(h1, 0.0)
    if compute_dtype != jnp.float32:
        h1 = h1.astype(compute_dtype)

    # Linear2 -> Dropout2 (identity in eval) -> ReLU.
    h2 = jnp.dot(h1, w2_ref[...], preferred_element_type=jnp.float32) + b2_ref[...]
    h2 = jnp.maximum(h2, 0.0)

    # Linear3 (1-wide value head): VPU multiply + XLU lane reduction, all f32.
    # True (tb, 1) store — no lane padding of the output.
    y = jnp.sum(h2 * w3_ref[...], axis=-1, keepdims=True) + b3_ref[...]
    out_ref[...] = y.astype(out_ref.dtype)


def _choose_batch_tile(batch, tb_max):
    """Batch tile: multiple of 8, <= tb_max, near-equal tiles (small padding
    overshoot), and >= 2 grid steps whenever possible so both v7x TensorCores
    get work on the 'parallel' batch axis."""
    b8 = -(-batch // 8) * 8                 # batch rounded up to sublanes
    n_tiles = max(1, -(-b8 // tb_max))
    if b8 >= 16 and n_tiles < 2:
        n_tiles = 2
    tb = -(-b8 // n_tiles)                  # roughly equal tiles
    tb = -(-tb // 8) * 8                    # multiple of 8
    return max(8, tb)


def critic_forward(x, params, *, tb_max=1024, compute_dtype=jnp.float32):
    """Critic forward. x: (B, state_dim) f32. Returns (B, 1) f32."""
    w1, b1, w2, b2, w3, b3 = params         # w3: (128, 1), b3: (1, 1)
    B, state_dim = x.shape
    out_dim = w3.shape[1]
    assert out_dim == 1, "Critic value head is 1-wide by spec"

    # One-time wrapper-side weight cast for the bf16 matmul path. Weights are
    # grid-resident (constant index maps), so casting here instead of in the
    # kernel also halves their one-time DMA and resident VMEM. The tiny layer-3
    # row stays f32 (it never touches the MXU). x is NOT wrapper-cast (that
    # would add an extra HBM pass).
    if compute_dtype != jnp.float32:
        w1 = w1.astype(compute_dtype)
        w2 = w2.astype(compute_dtype)
    w3_row = jnp.reshape(w3, (1, HIDDEN))   # (128, 1) column -> (1, 128) row

    # --- batch tiling: big adaptive tiles, multiple of 8, pad batch if needed ---
    tb = _choose_batch_tile(B, tb_max)
    Bp = -(-B // tb) * tb
    if Bp != B:
        x = jnp.pad(x, ((0, Bp - B), (0, 0)))
    grid = (Bp // tb,)

    # Activations/outputs tiled over batch; weights replicated (constant block
    # index 0 keeps them resident in VMEM across grid steps — no per-step DMA).
    in_specs = [
        pl.BlockSpec((tb, state_dim), lambda i: (i, 0)),       # x (tiled)
        pl.BlockSpec((state_dim, HIDDEN), lambda i: (0, 0)),   # w1 (resident)
        pl.BlockSpec((1, HIDDEN), lambda i: (0, 0)),           # b1
        pl.BlockSpec((HIDDEN, HIDDEN), lambda i: (0, 0)),      # w2
        pl.BlockSpec((1, HIDDEN), lambda i: (0, 0)),           # b2
        pl.BlockSpec((1, HIDDEN), lambda i: (0, 0)),           # w3 row
        pl.BlockSpec((1, 1), lambda i: (0, 0)),                # b3
    ]
    out_specs = pl.BlockSpec((tb, out_dim), lambda i: (i, 0))  # true (tb, 1)

    flops = 2 * Bp * (state_dim * HIDDEN + HIDDEN * HIDDEN + HIDDEN * out_dim)
    bytes_accessed = (
        4 * Bp * state_dim + 4 * Bp * out_dim
        + w1.size * w1.dtype.itemsize + w2.size * w2.dtype.itemsize
        + 4 * (w3_row.size + b1.size + b2.size + b3.size))

    kernel = functools.partial(_critic_kernel, compute_dtype=compute_dtype)

    out = pl.pallas_call(
        kernel,
        out_shape=jax.ShapeDtypeStruct((Bp, out_dim), jnp.float32),
        grid_spec=pl.GridSpec(
            grid=grid,
            in_specs=in_specs,
            out_specs=out_specs,
        ),
        compiler_params=pltpu.CompilerParams(
            dimension_semantics=("parallel",)),
        cost_estimate=pl.CostEstimate(
            flops=flops, transcendentals=0, bytes_accessed=bytes_accessed),
    )(x, w1, b1, w2, b2, w3_row, b3)

    # Slice away batch padding (output is already the true 1-wide head).
    return out[:B]


def _init_linear(key, fan_in, fan_out):
    """Deterministic PyTorch-style Linear init: U(-1/sqrt(fan_in), 1/sqrt(fan_in))."""
    kw, kb = jax.random.split(key)
    bound = 1.0 / jnp.sqrt(jnp.float32(fan_in))
    w = jax.random.uniform(kw, (fan_in, fan_out), jnp.float32, -bound, bound)
    b = jax.random.uniform(kb, (1, fan_out), jnp.float32, -bound, bound)
    return w, b


def _reference_forward(x, params):
    w1, b1, w2, b2, w3, b3 = params
    h1 = jnp.maximum(x @ w1 + b1, 0.0)
    h2 = jnp.maximum(h1 @ w2 + b2, 0.0)
    return h2 @ w3 + b3


if __name__ == "__main__":
    B = 64          # batch (small demo shape; wrapper handles arbitrary B)
    STATE_DIM = 32  # state_dim

    root = jax.random.PRNGKey(0)
    k_x, k1, k2, k3 = jax.random.split(root, 4)

    x = jax.random.normal(k_x, (B, STATE_DIM), jnp.float32)

    w1, b1 = _init_linear(k1, STATE_DIM, HIDDEN)
    w2, b2 = _init_linear(k2, HIDDEN, HIDDEN)
    w3, b3 = _init_linear(k3, HIDDEN, 1)
    params = (w1, b1, w2, b2, w3, b3)

    ref = _reference_forward(x, params)

    # f32 matmul path: tight tolerance against the f32 reference.
    y_f32 = jax.block_until_ready(critic_forward(x, params,
                                                 compute_dtype=jnp.float32))
    assert y_f32.shape == (B, 1)
    assert jnp.allclose(y_f32, ref, atol=1e-4, rtol=1e-4)

    # bf16 matmul-operand path (usable on v5e/v6e/v7x): looser tolerance.
    y_bf16 = jax.block_until_ready(critic_forward(x, params,
                                                  compute_dtype=jnp.bfloat16))
    assert y_bf16.shape == (B, 1)
    assert jnp.allclose(y_bf16, ref, atol=1e-1, rtol=1e-1)

    print("KERNEL_OK")
</pallas_src>

<mosaic_0001>
module attributes {stable_mosaic.version = 11 : i64} {
  func.func @_critic_kernel(%arg0: i32, %arg1: memref<32x32xf32, #tpu.memory_space<vmem>>, %arg2: memref<32x128xf32, #tpu.memory_space<vmem>>, %arg3: memref<1x128xf32, #tpu.memory_space<vmem>>, %arg4: memref<128x128xf32, #tpu.memory_space<vmem>>, %arg5: memref<1x128xf32, #tpu.memory_space<vmem>>, %arg6: memref<1x128xf32, #tpu.memory_space<vmem>>, %arg7: memref<1x1xf32, #tpu.memory_space<vmem>>, %arg8: memref<32x1xf32, #tpu.memory_space<vmem>>) attributes {dimension_semantics = [#tpu.dimension_semantics<parallel>], iteration_bounds = array<i64: 2>, scalar_prefetch = 0 : i64, scratch_operands = 0 : i64, tpu.core_type = #tpu.core_type<tc>, window_params = [{transform_indices = @transform_0, window_bounds = array<i64: 32, 32>}, {pipeline_mode = #tpu.pipeline_mode<synchronous>, transform_indices = @transform_1, window_bounds = array<i64: 32, 128>}, {pipeline_mode = #tpu.pipeline_mode<synchronous>, transform_indices = @transform_2, window_bounds = array<i64: 1, 128>}, {pipeline_mode = #tpu.pipeline_mode<synchronous>, transform_indices = @transform_3, window_bounds = array<i64: 128, 128>}, {pipeline_mode = #tpu.pipeline_mode<synchronous>, transform_indices = @transform_4, window_bounds = array<i64: 1, 128>}, {pipeline_mode = #tpu.pipeline_mode<synchronous>, transform_indices = @transform_5, window_bounds = array<i64: 1, 128>}, {pipeline_mode = #tpu.pipeline_mode<synchronous>, transform_indices = @transform_6, window_bounds = array<i64: 1, 1>}, {transform_indices = @transform_7, window_bounds = array<i64: 32, 1>}]} {
    %c0 = arith.constant 0 : index
    %c0_0 = arith.constant 0 : index
    %0 = vector.load %arg1[%c0, %c0_0] : memref<32x32xf32, #tpu.memory_space<vmem>>, vector<32x32xf32>
    %c0_1 = arith.constant 0 : index
    %c0_2 = arith.constant 0 : index
    %1 = vector.load %arg2[%c0_1, %c0_2] : memref<32x128xf32, #tpu.memory_space<vmem>>, vector<32x128xf32>
    %cst = arith.constant dense<0.000000e+00> : vector<32x128xf32>
    %2 = tpu.matmul %0, %1, %cst {dimension_numbers = #tpu.dot_dimension_numbers<[1], [0], [0], [1], [0, 0, 1, 1], [], []>} : vector<32x32xf32>, vector<32x128xf32>, vector<32x128xf32> -> vector<32x128xf32>
    %c0_3 = arith.constant 0 : index
    %c0_4 = arith.constant 0 : index
    %3 = vector.load %arg3[%c0_3, %c0_4] : memref<1x128xf32, #tpu.memory_space<vmem>>, vector<1x128xf32>
    %4 = vector.broadcast %3 : vector<1x128xf32> to vector<32x128xf32>
    %5 = arith.addf %2, %4 : vector<32x128xf32>
    %cst_5 = arith.constant 0.000000e+00 : f32
    %6 = vector.broadcast %cst_5 : f32 to vector<32x128xf32>
    %7 = arith.maximumf %5, %6 : vector<32x128xf32>
    %c0_6 = arith.constant 0 : index
    %c0_7 = arith.constant 0 : index
    %8 = vector.load %arg4[%c0_6, %c0_7] : memref<128x128xf32, #tpu.memory_space<vmem>>, vector<128x128xf32>
    %cst_8 = arith.constant dense<0.000000e+00> : vector<32x128xf32>
    %9 = tpu.matmul %7, %8, %cst_8 {dimension_numbers = #tpu.dot_dimension_numbers<[1], [0], [0], [1], [0, 0, 1, 1], [], []>} : vector<32x128xf32>, vector<128x128xf32>, vector<32x128xf32> -> vector<32x128xf32>
    %c0_9 = arith.constant 0 : index
    %c0_10 = arith.constant 0 : index
    %10 = vector.load %arg5[%c0_9, %c0_10] : memref<1x128xf32, #tpu.memory_space<vmem>>, vector<1x128xf32>
    %11 = vector.broadcast %10 : vector<1x128xf32> to vector<32x128xf32>
    %12 = arith.addf %9, %11 : vector<32x128xf32>
    %cst_11 = arith.constant 0.000000e+00 : f32
    %13 = vector.broadcast %cst_11 : f32 to vector<32x128xf32>
    %14 = arith.maximumf %12, %13 : vector<32x128xf32>
    %c0_12 = arith.constant 0 : index
    %c0_13 = arith.constant 0 : index
    %15 = vector.load %arg6[%c0_12, %c0_13] : memref<1x128xf32, #tpu.memory_space<vmem>>, vector<1x128xf32>
    %16 = vector.broadcast %15 : vector<1x128xf32> to vector<32x128xf32>
    %17 = arith.mulf %14, %16 : vector<32x128xf32>
    %cst_14 = arith.constant dense<0.000000e+00> : vector<32xf32>
    %18 = vector.multi_reduction <add>, %17, %cst_14 [1] : vector<32x128xf32> to vector<32xf32>
    %19 = vector.shape_cast %18 : vector<32xf32> to vector<32x1xf32>
    %c0_15 = arith.constant 0 : index
    %c0_16 = arith.constant 0 : index
    %20 = vector.load %arg7[%c0_15, %c0_16] : memref<1x1xf32, #tpu.memory_space<vmem>>, vector<1x1xf32>
    %21 = vector.broadcast %20 : vector<1x1xf32> to vector<32x1xf32>
    %22 = arith.addf %19, %21 : vector<32x1xf32>
    %c0_17 = arith.constant 0 : index
    %c0_18 = arith.constant 0 : index
    %23 = vector.load %arg8[%c0_17, %c0_18] : memref<32x1xf32, #tpu.memory_space<vmem>>, vector<32x1xf32>
    tpu.vector_store %arg8[%c0_17, %c0_18], %22 {strides = array<i32>} : memref<32x1xf32, #tpu.memory_space<vmem>>, vector<32x1xf32>,
    return
  }
  func.func @transform_0(%arg0: i32) -> (i32, i32) {
    %c0_i32 = arith.constant 0 : i32
    %c0_i32_0 = arith.constant 0 : i32
    return %arg0, %c0_i32 : i32, i32
  }
  func.func @transform_1(%arg0: i32) -> (i32, i32) {
    %c0_i32 = arith.constant 0 : i32
    %c0_i32_0 = arith.constant 0 : i32
    %c0_i32_1 = arith.constant 0 : i32
    return %c0_i32, %c0_i32_0 : i32, i32
  }
  func.func @transform_2(%arg0: i32) -> (i32, i32) {
    %c0_i32 = arith.constant 0 : i32
    %c0_i32_0 = arith.constant 0 : i32
    %c0_i32_1 = arith.constant 0 : i32
    return %c0_i32, %c0_i32_0 : i32, i32
  }
  func.func @transform_3(%arg0: i32) -> (i32, i32) {
    %c0_i32 = arith.constant 0 : i32
    %c0_i32_0 = arith.constant 0 : i32
    %c0_i32_1 = arith.constant 0 : i32
    return %c0_i32, %c0_i32_0 : i32, i32
  }
  func.func @transform_4(%arg0: i32) -> (i32, i32) {
    %c0_i32 = arith.constant 0 : i32
    %c0_i32_0 = arith.constant 0 : i32
    %c0_i32_1 = arith.constant 0 : i32
    return %c0_i32, %c0_i32_0 : i32, i32
  }
  func.func @transform_5(%arg0: i32) -> (i32, i32) {
    %c0_i32 = arith.constant 0 : i32
    %c0_i32_0 = arith.constant 0 : i32
    %c0_i32_1 = arith.constant 0 : i32
    return %c0_i32, %c0_i32_0 : i32, i32
  }
  func.func @transform_6(%arg0: i32) -> (i32, i32) {
    %c0_i32 = arith.constant 0 : i32
    %c0_i32_0 = arith.constant 0 : i32
    %c0_i32_1 = arith.constant 0 : i32
    return %c0_i32, %c0_i32_0 : i32, i32
  }
  func.func @transform_7(%arg0: i32) -> (i32, i32) {
    %c0_i32 = arith.constant 0 : i32
    %c0_i32_0 = arith.constant 0 : i32
    return %arg0, %c0_i32 : i32, i32
  }
}

</mosaic_0001>

<llo_original>
// kernel: tpu_custom_call.1
$region0: #{tpu_custom_call.1}
  #allocation0 [shape = 'u32[]', space=smem, size = 0x4, offset = 0x4, fixed_abs, tag = 'smem constant byte address 0x4 - core index']
  #allocation1 [shape = 'u32[144,128]{1,0:T(1,128)}', space=vmem, size = 0x12000, scoped, tag = 'internal scratch']
  #allocation2 [shape = 'f32[1,1]{1,0:T(1,128)S(1)}', space=vmem, size = 0x200, scoped, tag = 'scoped memory for tpu_custom_call.1']
  %s0 = inlined_call_operand.vmem [shape: f32[64,32], index: 0, kind: input, shape index: {}]
  %s1 = inlined_call_operand.vmem [shape: f32[32,128], index: 1, kind: input, shape index: {}]
  %s2 = inlined_call_operand.vmem [shape: f32[1,128], index: 2, kind: input, shape index: {}]
  %s3 = inlined_call_operand.hbm [shape: f32[128,128], index: 3, kind: input, shape index: {}]
  %s4 = inlined_call_operand.vmem [shape: f32[1,128], index: 4, kind: input, shape index: {}]
  %s5 = inlined_call_operand.vmem [shape: f32[1,128], index: 5, kind: input, shape index: {}]
  %s6 = inlined_call_operand.<no memory space> [shape: f32[1,1], index: 6, kind: input, shape index: {}]
  %s7 = inlined_call_operand.vmem [shape: f32[64,1], index: 7, kind: output, shape index: {}]
  %s8 = sld [smem:[#allocation0]]
  $region65: #{tpu_custom_call.1} parent=0
    _
  %s10 = ssub.s32 1, %s8
  %s11 = scalar_select 0, %s10, %s8
  %v12 = vstv %s6
  %13 = vst [vmem:[#allocation2] sm:$0x1] %v12
  $region1: #{tpu_custom_call.1} parent=0
    #allocation3 [shape = 'u8[65536]{0}', space=vmem, size = 0x10000, scoped, tag = 'input window, operand 3, single buffered']
    #allocation4 [shape = 's32[2]{0}', space=sflag, size = 0x8, scoped, tag = 'scoped memory for tpu_custom_call.1']
    %14 = vsyncpa [#allocation4], 0
    loop: start=0, step=1, limit=4
    $region2: #{tpu_custom_call.1} parent=1 // loop_pre_header
      _
    $region3: #{tpu_custom_call.1} parent=1 // loop_header
      %s16 = sphi 0, %s20
      %p17 = scmp.ge.s32.totalorder %s16, 4
      %s26 = sphi 0, %s28
      %s29 = sphi 0, %s26
      %s30 = sphi 0, %s29
      %s46 = sphi 0, %s30
      %s50 = sphi 0, %s50
      %s52 = sphi 0, %s50
      %s53 = sphi 0, %s52
      %s67 = sphi 0, %s53
      %s71 = sphi 0, %s71
      %s73 = sphi 0, %s71
      %s74 = sphi 0, %s73
      %s88 = sphi 0, %s74
      %s92 = sphi 0, %s92
      %s94 = sphi 0, %s92
      %s95 = sphi 0, %s94
      %s109 = sphi 0, %s95
      %s113 = sphi 0, %s113
      %s115 = sphi 0, %s113
      %s116 = sphi 0, %s115
      %s130 = sphi 0, %s116
      %s134 = sphi 0, %s134
      %s136 = sphi 0, %s134
      %s137 = sphi 0, %s136
      %s151 = sphi 0, %s137
      %s155 = sphi 0, %s155
      %s157 = sphi 0, %s155
      %s158 = sphi 0, %s157
      %s172 = sphi 0, %s158
      %s178 = sphi 0, %s180
      %s181 = sphi 0, %s178
      %s182 = sphi 0, %s181
      %s198 = sphi 0, %s182
    $region4: #{tpu_custom_call.1} parent=1 // loop_header_branch
      %19 = sbr.rel (%p17) target = $region8
    $region5: #{tpu_custom_call.1} parent=1 // loop_body
      %s21 = ssub.s32 %s16, 1
      %s22 = ssub.s32 %s16, 2
      %s23 = sadd.s32 %s16, 1
      %s24 = ssub.s32 %s16, %s23
      %p25 = scmp.eq.s32.totalorder %s24, 0
      %s27 = sadd.s32 %s26, 1
      %s28 = scalar_select %p25, %s26, %s27
      %p31 = pneg %p25
      %p32 = scmp.eq.s32.totalorder %s16, 1
      %p33 = por %p31, %p32
      %p34 = scmp.ne.s32.totalorder %s26, %s29
      %p35 = scmp.eq.s32.totalorder %s16, 0
      %p36 = por %p34, %p35
      %p37 = scmp.ne.s32.totalorder %s26, %s29
      %p38 = scmp.eq.s32.totalorder %s21, 1
      %p39 = por %p37, %p38
      %p40 = scmp.ne.s32.totalorder %s29, %s30
      %p41 = scmp.eq.s32.totalorder %s21, 0
      %p42 = por %p40, %p41
      %p43 = scmp.ne.s32.totalorder %s29, %s30
      %p44 = scmp.eq.s32.totalorder %s22, 1
      %p45 = por %p43, %p44
      %p47 = scmp.ne.s32.totalorder %s30, %s46
      %p48 = scmp.eq.s32.totalorder %s22, 0
      %p49 = por %p47, %p48
      %s51 = sadd.s32 %s50, 1
      %p54 = scmp.eq.s32.totalorder %s16, 1
      %p55 = scmp.ne.s32.totalorder %s50, %s52
      %p56 = scmp.eq.s32.totalorder %s16, 0
      %p57 = por %p55, %p56
      %p58 = scmp.ne.s32.totalorder %s50, %s52
      %p59 = scmp.eq.s32.totalorder %s21, 1
      %p60 = por %p58, %p59
      %p61 = scmp.ne.s32.totalorder %s52, %s53
      %p62 = scmp.eq.s32.totalorder %s21, 0
      %p63 = por %p61, %p62
      %p64 = scmp.ne.s32.totalorder %s52, %s53
      %p65 = scmp.eq.s32.totalorder %s22, 1
      %p66 = por %p64, %p65
      %p68 = scmp.ne.s32.totalorder %s53, %s67
      %p69 = scmp.eq.s32.totalorder %s22, 0
      %p70 = por %p68, %p69
      %s72 = sadd.s32 %s71, 1
      %p75 = scmp.eq.s32.totalorder %s16, 1
      %p76 = scmp.ne.s32.totalorder %s71, %s73
      %p77 = scmp.eq.s32.totalorder %s16, 0
      %p78 = por %p76, %p77
      %p79 = scmp.ne.s32.totalorder %s71, %s73
      %p80 = scmp.eq.s32.totalorder %s21, 1
      %p81 = por %p79, %p80
      %p82 = scmp.ne.s32.totalorder %s73, %s74
      %p83 = scmp.eq.s32.totalorder %s21, 0
      %p84 = por %p82, %p83
      %p85 = scmp.ne.s32.totalorder %s73, %s74
      %p86 = scmp.eq.s32.totalorder %s22, 1
      %p87 = por %p85, %p86
      %p89 = scmp.ne.s32.totalorder %s74, %s88
      %p90 = scmp.eq.s32.totalorder %s22, 0
      %p91 = por %p89, %p90
      %s93 = sadd.s32 %s92, 1
      %p96 = scmp.eq.s32.totalorder %s16, 1
      %p97 = scmp.ne.s32.totalorder %s92, %s94
      %p98 = scmp.eq.s32.totalorder %s16, 0
      %p99 = por %p97, %p98
      %p100 = scmp.ne.s32.totalorder %s92, %s94
      %p101 = scmp.eq.s32.totalorder %s21, 1
      %p102 = por %p100, %p101
      %p103 = scmp.ne.s32.totalorder %s94, %s95
      %p104 = scmp.eq.s32.totalorder %s21, 0
      %p105 = por %p103, %p104
      %p106 = scmp.ne.s32.totalorder %s94, %s95
      %p107 = scmp.eq.s32.totalorder %s22, 1
      %p108 = por %p106, %p107
      %p110 = scmp.ne.s32.totalorder %s95, %s109
      %p111 = scmp.eq.s32.totalorder %s22, 0
      %p112 = por %p110, %p111
      %s114 = sadd.s32 %s113, 1
      %p117 = scmp.eq.s32.totalorder %s16, 1
      %p118 = scmp.ne.s32.totalorder %s113, %s115
      %p119 = scmp.eq.s32.totalorder %s16, 0
      %p120 = por %p118, %p119
      %p121 = scmp.ne.s32.totalorder %s113, %s115
      %p122 = scmp.eq.s32.totalorder %s21, 1
      %p123 = por %p121, %p122
      %p124 = scmp.ne.s32.totalorder %s115, %s116
      %p125 = scmp.eq.s32.totalorder %s21, 0
      %p126 = por %p124, %p125
      %p127 = scmp.ne.s32.totalorder %s115, %s116
      %p128 = scmp.eq.s32.totalorder %s22, 1
      %p129 = por %p127, %p128
      %p131 = scmp.ne.s32.totalorder %s116, %s130
      %p132 = scmp.eq.s32.totalorder %s22, 0
      %p133 = por %p131, %p132
      %s135 = sadd.s32 %s134, 1
      %p138 = scmp.eq.s32.totalorder %s16, 1
      %p139 = scmp.ne.s32.totalorder %s134, %s136
      %p140 = scmp.eq.s32.totalorder %s16, 0
      %p141 = por %p139, %p140
      %p142 = scmp.ne.s32.totalorder %s134, %s136
      %p143 = scmp.eq.s32.totalorder %s21, 1
      %p144 = por %p142, %p143
      %p145 = scmp.ne.s32.totalorder %s136, %s137
      %p146 = scmp.eq.s32.totalorder %s21, 0
      %p147 = por %p145, %p146
      %p148 = scmp.ne.s32.totalorder %s136, %s137
      %p149 = scmp.eq.s32.totalorder %s22, 1
      %p150 = por %p148, %p149
      %p152 = scmp.ne.s32.totalorder %s137, %s151
      %p153 = scmp.eq.s32.totalorder %s22, 0
      %p154 = por %p152, %p153
      %s156 = sadd.s32 %s155, 1
      %p159 = scmp.eq.s32.totalorder %s16, 1
      %p160 = scmp.ne.s32.totalorder %s155, %s157
      %p161 = scmp.eq.s32.totalorder %s16, 0
      %p162 = por %p160, %p161
      %p163 = scmp.ne.s32.totalorder %s155, %s157
      %p164 = scmp.eq.s32.totalorder %s21, 1
      %p165 = por %p163, %p164
      %p166 = scmp.ne.s32.totalorder %s157, %s158
      %p167 = scmp.eq.s32.totalorder %s21, 0
      %p168 = por %p166, %p167
      %p169 = scmp.ne.s32.totalorder %s157, %s158
      %p170 = scmp.eq.s32.totalorder %s22, 1
      %p171 = por %p169, %p170
      %p173 = scmp.ne.s32.totalorder %s158, %s172
      %p174 = scmp.eq.s32.totalorder %s22, 0
      %p175 = por %p173, %p174
      %s176 = ssub.s32 %s16, %s23
      %p177 = scmp.eq.s32.totalorder %s176, 0
      %s179 = sadd.s32 %s178, 1
      %s180 = scalar_select %p177, %s178, %s179
      %p183 = pneg %p177
      %p184 = scmp.eq.s32.totalorder %s16, 1
      %p185 = por %p183, %p184
      %p186 = scmp.ne.s32.totalorder %s178, %s181
      %p187 = scmp.eq.s32.totalorder %s16, 0
      %p188 = por %p186, %p187
      %p189 = scmp.ne.s32.totalorder %s178, %s181
      %p190 = scmp.eq.s32.totalorder %s21, 1
      %p191 = por %p189, %p190
      %p192 = scmp.ne.s32.totalorder %s181, %s182
      %p193 = scmp.eq.s32.totalorder %s21, 0
      %p194 = por %p192, %p193
      %p195 = scmp.ne.s32.totalorder %s181, %s182
      %p196 = scmp.eq.s32.totalorder %s22, 1
      %p197 = por %p195, %p196
      %p199 = scmp.ne.s32.totalorder %s182, %s198
      %p200 = scmp.eq.s32.totalorder %s22, 0
      %p201 = por %p199, %p200
      %p202 = scmp.le.s32.totalorder 1, %s16
      %p203 = scmp.lt.s32.totalorder %s16, 3
      %p204 = pnand %p202, %p203
      %p205 = pneg %p204
      // Predicated region
      $region9: #{tpu_custom_call.1} parent=5 // pred_check
        _
      $region10: #{tpu_custom_call.1} parent=5 // pred_check_branch
        %207 = sbr.rel (%p204) target = $region12
      $region11: #{tpu_custom_call.1} parent=5 // pred_region
        %s208 = ssub.s32 %s16, 1
        // Predicated region
        $region13: #{tpu_custom_call.1} parent=11 // pred_check
          %p209 = pneg %p63
        $region14: #{tpu_custom_call.1} parent=11 // pred_check_branch
          %211 = sbr.rel (%p209) target = $region16
        $region15: #{tpu_custom_call.1} parent=11 // pred_region
          _
        $region16: #{tpu_custom_call.1} parent=11 // pred_fallthru
          _
        // Predicated region
        $region17: #{tpu_custom_call.1} parent=11 // pred_check
          %p212 = pneg %p84
        $region18: #{tpu_custom_call.1} parent=11 // pred_check_branch
          %214 = sbr.rel (%p212) target = $region20
        $region19: #{tpu_custom_call.1} parent=11 // pred_region
          _
        $region20: #{tpu_custom_call.1} parent=11 // pred_fallthru
          _
        // Predicated region
        $region21: #{tpu_custom_call.1} parent=11 // pred_check
          %p215 = pneg %p105
        $region22: #{tpu_custom_call.1} parent=11 // pred_check_branch
          %217 = sbr.rel (%p215) target = $region24
        $region23: #{tpu_custom_call.1} parent=11 // pred_region
          %s219 = ssub.s32 2048, 2048
          %220 = vsyncadd [#allocation4], %s219
          %s221 = sshll.u32 [#allocation3], 4
          %s222 = int_to_ptr.vmem [resolvable:$true] %s221
          %227 = dma.hbm_to_vmem [thread:$0]  %s3, 2048, %s222, [#allocation4], 128, 128, 8
        $region24: #{tpu_custom_call.1} parent=11 // pred_fallthru
          _
        // Predicated region
        $region25: #{tpu_custom_call.1} parent=11 // pred_check
          %p228 = pneg %p126
        $region26: #{tpu_custom_call.1} parent=11 // pred_check_branch
          %230 = sbr.rel (%p228) target = $region28
        $region27: #{tpu_custom_call.1} parent=11 // pred_region
          _
        $region28: #{tpu_custom_call.1} parent=11 // pred_fallthru
          _
        // Predicated region
        $region29: #{tpu_custom_call.1} parent=11 // pred_check
          %p231 = pneg %p147
        $region30: #{tpu_custom_call.1} parent=11 // pred_check_branch
          %233 = sbr.rel (%p231) target = $region32
        $region31: #{tpu_custom_call.1} parent=11 // pred_region
          _
        $region32: #{tpu_custom_call.1} parent=11 // pred_fallthru
          _
        // Predicated region
        $region33: #{tpu_custom_call.1} parent=11 // pred_check
          %p234 = pneg %p168
        $region34: #{tpu_custom_call.1} parent=11 // pred_check_branch
          %236 = sbr.rel (%p234) target = $region36
        $region35: #{tpu_custom_call.1} parent=11 // pred_region
          _
        $region36: #{tpu_custom_call.1} parent=11 // pred_fallthru
          _
      $region12: #{tpu_custom_call.1} parent=5 // pred_fallthru
        _
      %p237 = scmp.lt.s32.totalorder %s16, 2
      // Predicated region
      $region37: #{tpu_custom_call.1} parent=5 // pred_check
        %p238 = pneg %p237
      $region38: #{tpu_custom_call.1} parent=5 // pred_check_branch
        %240 = sbr.rel (%p238) target = $region40
      $region39: #{tpu_custom_call.1} parent=5 // pred_region
        // Predicated region
        $region41: #{tpu_custom_call.1} parent=39 // pred_check
          %p241 = pneg %p36
        $region42: #{tpu_custom_call.1} parent=39 // pred_check_branch
          %243 = sbr.rel (%p241) target = $region44
        $region43: #{tpu_custom_call.1} parent=39 // pred_region
          %s244 = smul.u32 4, %s16
          %p245 = scmp.lt.s32.totalorder %s244, 7
          %s246 = scalar_select %p245, %s244, 7
          %s247 = smul.addr %s246, 8
          %s248 = scalar_lea.vmem %s0, %s247
          %s249 = smul.u32 4, %s16
        $region44: #{tpu_custom_call.1} parent=39 // pred_fallthru
          _
      $region40: #{tpu_custom_call.1} parent=5 // pred_fallthru
        _
      %p250 = scmp.le.s32.totalorder 1, %s16
      %p251 = scmp.lt.s32.totalorder %s16, 3
      %p252 = pnand %p250, %p251
      %p253 = pneg %p252
      // Predicated region
      $region45: #{tpu_custom_call.1} parent=5 // pred_check
        _
      $region46: #{tpu_custom_call.1} parent=5 // pred_check_branch
        %255 = sbr.rel (%p252) target = $region48
      $region47: #{tpu_custom_call.1} parent=5 // pred_region
        %s256 = ssub.s32 %s16, 1
        // Predicated region
        $region49: #{tpu_custom_call.1} parent=47 // pred_check
          %p257 = pneg %p105
        $region50: #{tpu_custom_call.1} parent=47 // pred_check_branch
          %259 = sbr.rel (%p257) target = $region52
        $region51: #{tpu_custom_call.1} parent=47 // pred_region
          %260 = dma.done [#allocation4], 2048
        $region52: #{tpu_custom_call.1} parent=47 // pred_fallthru
          _
        %s261 = smul.u32 4, %s21
        %p262 = scmp.lt.s32.totalorder %s261, 7
        %s263 = scalar_select %p262, %s261, 7
        %s264 = smul.addr %s263, 8
        %s265 = scalar_lea.vmem %s0, %s264
        %p266 = pneg %p42
        %p267 = pneg %p39
        %p268 = pneg %p63
        %p269 = pneg %p60
        %p270 = pneg %p84
        %p271 = pneg %p81
        %p272 = pneg %p105
        %p273 = pneg %p102
        %p274 = pneg %p126
        %p275 = pneg %p123
        %p276 = pneg %p147
        %p277 = pneg %p144
        %p278 = pneg %p168
        %p279 = pneg %p165
        %p280 = pneg %p194
        %p281 = pneg %p191
        %s282 = smul.u32 4, %s21
        %p283 = scmp.lt.s32.totalorder %s282, 7
        %s284 = scalar_select %p283, %s282, 7
        %s285 = smul.addr %s284, 8
        %s286 = scalar_lea.vmem %s7, %s285
        %s287 = smul.u32 4, %s21
        %p288 = scmp.lt.s32.totalorder %s287, 7
        %s289 = scalar_select %p288, %s287, 7
        %s290 = smul.addr %s289, 8
        %s291 = scalar_lea.vmem %s0, %s290
        %s292 = smul.u32 4, %s21
        %s293 = smul.u32 4, %s21
        %p294 = scmp.lt.s32.totalorder %s293, 7
        %s295 = scalar_select %p294, %s293, 7
        %s296 = smul.addr %s295, 8
        %s297 = scalar_lea.vmem %s7, %s296
        %s298 = smul.u32 4, %s21
        %v299 = vld [vmem:[%s291] sm:$0xff]
        %v300 = vld [vmem:[%s291 + $0x8] sm:$0xff]
        %v301 = vld [vmem:[%s291 + $0x10] sm:$0xff]
        %v302 = vld [vmem:[%s291 + $0x18] sm:$0xff]
        %v303 = vld [vmem:[%s1] sm:$0xff]
        %v304 = vld [vmem:[%s1 + $0x8] sm:$0xff]
        %v305 = vld [vmem:[%s1 + $0x10] sm:$0xff]
        %v306 = vld [vmem:[%s1 + $0x18] sm:$0xff]
        %v307 = vld [vmem:[%s2] sm:$0x1]
        %v309 = vlaneseq
        %v310 = vshrl.u32 %v309, 7
        %v311 = vsub.s32 0, %v310
        %v312 = vrot.slane %v307, %v311
        %vm314 = vcmask 261120
        %v316 = vsel %vm314, %v299, 0
        %v319 = vsel %vm314, %v300, 0
        %v322 = vsel %vm314, %v301, 0
        %v325 = vsel %vm314, %v302, 0
        %327 = vmatprep.subr.mxu0 0.0
        %328 = vmatpush1.msra.mxu0 %v303
        %329 = vmatprep.subr.mxu0 0.0
        %330 = vmatpush1.msra.mxu0 %v304
        %331 = vmatprep.subr.mxu0 0.0
        %332 = vmatpush1.msra.mxu0 %v305
        %333 = vmatprep.subr.mxu0 0.0
        %334 = vmatpush1.msra.mxu0 %v306
        %335 = vmatprep.subr.mxu0 0.0
        %336 = vmatpush1.msra.mxu0 0.0
        %337 = vmatprep.subr.mxu0 0.0
        %338 = vmatpush1.msra.mxu0 0.0
        %339 = vmatprep.subr.mxu0 0.0
        %340 = vmatpush1.msra.mxu0 0.0
        %341 = vmatprep.subr.mxu0 0.0
        %342 = vmatpush1.msra.mxu0 0.0
        %343 = vmatprep.subr.mxu0 0.0
        %344 = vmatpush1.msra.mxu0 0.0
        %345 = vmatprep.subr.mxu0 0.0
        %346 = vmatpush1.msra.mxu0 0.0
        %347 = vmatprep.subr.mxu0 0.0
        %348 = vmatpush1.msra.mxu0 0.0
        %349 = vmatprep.subr.mxu0 0.0
        %350 = vmatpush1.msra.mxu0 0.0
        %351 = vmatprep.subr.mxu0 0.0
        %352 = vmatpush1.msra.mxu0 0.0
        %353 = vmatprep.subr.mxu0 0.0
        %354 = vmatpush1.msra.mxu0 0.0
        %355 = vmatprep.subr.mxu0 0.0
        %356 = vmatpush1.msra.mxu0 0.0
        %357 = vmatprep.subr.mxu0 0.0
        %358 = vmatpush1.msra.mxu0 0.0
        %359 = vmatprep.subr.mxu0 0.0
        %360 = vmatpush1.msra.mxu0 0.0
        %361 = vmatprep.subr.mxu0 0.0
        %362 = vmatpush1.msra.mxu0 0.0
        %363 = vmatprep.subr.mxu0 0.0
        %364 = vmatpush1.msra.mxu0 0.0
        %365 = vmatprep.subr.mxu0 0.0
        %366 = vmatpush1.msra.mxu0 0.0
        %367 = vmatprep.subr.mxu0 0.0
        %368 = vmatpush1.msra.mxu0 0.0
        %369 = vmatprep.subr.mxu0 0.0
        %370 = vmatpush1.msra.mxu0 0.0
        %371 = vmatprep.subr.mxu0 0.0
        %372 = vmatpush1.msra.mxu0 0.0
        %373 = vmatprep.subr.mxu0 0.0
        %374 = vmatpush1.msra.mxu0 0.0
        %375 = vmatprep.subr.mxu0 0.0
        %376 = vmatpush1.msra.mxu0 0.0
        %377 = vmatprep.subr.mxu0 0.0
        %378 = vmatpush1.msra.mxu0 0.0
        %379 = vmatprep.subr.mxu0 0.0
        %380 = vmatpush1.msra.mxu0 0.0
        %381 = vmatprep.subr.mxu0 0.0
        %382 = vmatpush1.msra.mxu0 0.0
        %383 = vmatprep.subr.mxu0 0.0
        %384 = vmatpush1.msra.mxu0 0.0
        %385 = vmatprep.subr.mxu0 0.0
        %386 = vmatpush1.msra.mxu0 0.0
        %387 = vmatprep.subr.mxu0 0.0
        %388 = vmatpush1.msra.mxu0 0.0
        %389 = vmatprep.subr.mxu0 0.0
        %390 = vmatpush1.msra.mxu0 0.0
        %391 = vmatprep.mubr.f32.mxu0 0.0
        %392 = vmatmul.mubr.f32.gmra.mrb[0].mxu0 %v316
        %v393 = vpop.f32.mrb[0].mxu0
        %v394 = vadd.f32 %v312, %v393
        %v395 = vpop.f32.mrb[0].mxu0
        %396 = vmatprep.mubr.f32.mxu0 0.0
        %397 = vmatmul.mubr.f32.gmra.mrb[0].mxu0 %v319
        %v398 = vpop.f32.mrb[0].mxu0
        %v399 = vadd.f32 %v312, %v398
        %v400 = vpop.f32.mrb[0].mxu0
        %401 = vmatprep.mubr.f32.mxu0 0.0
        %402 = vmatmul.mubr.f32.gmra.mrb[0].mxu0 %v322
        %v403 = vpop.f32.mrb[0].mxu0
        %v404 = vadd.f32 %v312, %v403
        %v405 = vpop.f32.mrb[0].mxu0
        %406 = vmatprep.mubr.f32.mxu0 0.0
        %407 = vmatmul.mubr.f32.gmra.mrb[0].mxu0 %v325
        %v408 = vpop.f32.mrb[0].mxu0
        %v409 = vadd.f32 %v312, %v408
        %v410 = vpop.f32.mrb[0].mxu0
        %411 = vdwg.mxu0
        %v412 = vmax.f32 %v394, 0.0
        %v413 = vmax.f32 %v399, 0.0
        %v414 = vmax.f32 %v404, 0.0
        %v415 = vmax.f32 %v409, 0.0
        %v416 = vld [vmem:[#allocation3] sm:$0xff]
        %v417 = vld [vmem:[#allocation3 + $0x8] sm:$0xff]
        %v418 = vld [vmem:[#allocation3 + $0x10] sm:$0xff]
        %v419 = vld [vmem:[#allocation3 + $0x18] sm:$0xff]
        %v420 = vld [vmem:[#allocation3 + $0x20] sm:$0xff]
        %v421 = vld [vmem:[#allocation3 + $0x28] sm:$0xff]
        %v422 = vld [vmem:[#allocation3 + $0x30] sm:$0xff]
        %v423 = vld [vmem:[#allocation3 + $0x38] sm:$0xff]
        %v424 = vld [vmem:[#allocation3 + $0x40] sm:$0xff]
        %v425 = vld [vmem:[#allocation3 + $0x48] sm:$0xff]
        %v426 = vld [vmem:[#allocation3 + $0x50] sm:$0xff]
        %v427 = vld [vmem:[#allocation3 + $0x58] sm:$0xff]
        %v428 = vld [vmem:[#allocation3 + $0x60] sm:$0xff]
        %v429 = vld [vmem:[#allocation3 + $0x68] sm:$0xff]
        %v430 = vld [vmem:[#allocation3 + $0x70] sm:$0xff]
        %v431 = vld [vmem:[#allocation3 + $0x78] sm:$0xff]
        %v432 = vld [vmem:[%s4] sm:$0x1]
        %v434 = vlaneseq
        %v435 = vshrl.u32 %v434, 7
        %v436 = vsub.s32 0, %v435
        %v437 = vrot.slane %v432, %v436
        %439 = vmatprep.subr.mxu0 0.0
        %440 = vmatpush1.msra.mxu0 %v416
        %441 = vmatprep.subr.mxu0 0.0
        %442 = vmatpush1.msra.mxu0 %v417
        %443 = vmatprep.subr.mxu0 0.0
        %444 = vmatpush1.msra.mxu0 %v418
        %445 = vmatprep.subr.mxu0 0.0
        %446 = vmatpush1.msra.mxu0 %v419
        %447 = vmatprep.subr.mxu0 0.0
        %448 = vmatpush1.msra.mxu0 %v420
        %449 = vmatprep.subr.mxu0 0.0
        %450 = vmatpush1.msra.mxu0 %v421
        %451 = vmatprep.subr.mxu0 0.0
        %452 = vmatpush1.msra.mxu0 %v422
        %453 = vmatprep.subr.mxu0 0.0
        %454 = vmatpush1.msra.mxu0 %v423
        %455 = vmatprep.subr.mxu0 0.0
        %456 = vmatpush1.msra.mxu0 %v424
        %457 = vmatprep.subr.mxu0 0.0
        %458 = vmatpush1.msra.mxu0 %v425
        %459 = vmatprep.subr.mxu0 0.0
        %460 = vmatpush1.msra.mxu0 %v426
        %461 = vmatprep.subr.mxu0 0.0
        %462 = vmatpush1.msra.mxu0 %v427
        %463 = vmatprep.subr.mxu0 0.0
        %464 = vmatpush1.msra.mxu0 %v428
        %465 = vmatprep.subr.mxu0 0.0
        %466 = vmatpush1.msra.mxu0 %v429
        %467 = vmatprep.subr.mxu0 0.0
        %468 = vmatpush1.msra.mxu0 %v430
        %469 = vmatprep.subr.mxu0 0.0
        %470 = vmatpush1.msra.mxu0 %v431
        %471 = vmatprep.subr.mxu0 0.0
        %472 = vmatpush1.msra.mxu0 0.0
        %473 = vmatprep.subr.mxu0 0.0
        %474 = vmatpush1.msra.mxu0 0.0
        %475 = vmatprep.subr.mxu0 0.0
        %476 = vmatpush1.msra.mxu0 0.0
        %477 = vmatprep.subr.mxu0 0.0
        %478 = vmatpush1.msra.mxu0 0.0
        %479 = vmatprep.subr.mxu0 0.0
        %480 = vmatpush1.msra.mxu0 0.0
        %481 = vmatprep.subr.mxu0 0.0
        %482 = vmatpush1.msra.mxu0 0.0
        %483 = vmatprep.subr.mxu0 0.0
        %484 = vmatpush1.msra.mxu0 0.0
        %485 = vmatprep.subr.mxu0 0.0
        %486 = vmatpush1.msra.mxu0 0.0
        %487 = vmatprep.subr.mxu0 0.0
        %488 = vmatpush1.msra.mxu0 0.0
        %489 = vmatprep.subr.mxu0 0.0
        %490 = vmatpush1.msra.mxu0 0.0
        %491 = vmatprep.subr.mxu0 0.0
        %492 = vmatpush1.msra.mxu0 0.0
        %493 = vmatprep.subr.mxu0 0.0
        %494 = vmatpush1.msra.mxu0 0.0
        %495 = vmatprep.subr.mxu0 0.0
        %496 = vmatpush1.msra.mxu0 0.0
        %497 = vmatprep.subr.mxu0 0.0
        %498 = vmatpush1.msra.mxu0 0.0
        %499 = vmatprep.subr.mxu0 0.0
        %500 = vmatpush1.msra.mxu0 0.0
        %501 = vmatprep.subr.mxu0 0.0
        %502 = vmatpush1.msra.mxu0 0.0
        %503 = vmatprep.mubr.f32.mxu0 0.0
        %504 = vmatmul.mubr.f32.gmra.mrb[0].mxu0 %v412
        %v505 = vpop.f32.mrb[0].mxu0
        %v506 = vadd.f32 %v437, %v505
        %v507 = vpop.f32.mrb[0].mxu0
        %508 = vmatprep.mubr.f32.mxu0 0.0
        %509 = vmatmul.mubr.f32.gmra.mrb[0].mxu0 %v413
        %v510 = vpop.f32.mrb[0].mxu0
        %v511 = vadd.f32 %v437, %v510
        %v512 = vpop.f32.mrb[0].mxu0
        %513 = vmatprep.mubr.f32.mxu0 0.0
        %514 = vmatmul.mubr.f32.gmra.mrb[0].mxu0 %v414
        %v515 = vpop.f32.mrb[0].mxu0
        %v516 = vadd.f32 %v437, %v515
        %v517 = vpop.f32.mrb[0].mxu0
        %518 = vmatprep.mubr.f32.mxu0 0.0
        %519 = vmatmul.mubr.f32.gmra.mrb[0].mxu0 %v415
        %v520 = vpop.f32.mrb[0].mxu0
        %v521 = vadd.f32 %v437, %v520
        %v522 = vpop.f32.mrb[0].mxu0
        %523 = vdwg.mxu0
        %v524 = vmax.f32 %v506, 0.0
        %v525 = vmax.f32 %v511, 0.0
        %v526 = vmax.f32 %v516, 0.0
        %v527 = vmax.f32 %v521, 0.0
        %v528 = vld [vmem:[%s5] sm:$0x1]
        %v530 = vlaneseq
        %v531 = vshrl.u32 %v530, 7
        %v532 = vsub.s32 0, %v531
        %v533 = vrot.slane %v528, %v532
        %v535 = vmul.f32 %v524, %v533
        %v536 = vmul.f32 %v525, %v533
        %v537 = vmul.f32 %v526, %v533
        %v538 = vmul.f32 %v527, %v533
        %539 = vadd.xlane.f32.xlu0 %v535
        %v540 = vpop.xlane.xlu0 %539
        %541 = vadd.xlane.f32.xlu0 %v536
        %v542 = vpop.xlane.xlu0 %541
        %543 = vadd.xlane.f32.xlu0 %v537
        %v544 = vpop.xlane.xlu0 %543
        %545 = vadd.xlane.f32.xlu0 %v538
        %v546 = vpop.xlane.xlu0 %545
        %v547 = vld [vmem:[#allocation2] sm:$0x1]
        %v549 = vlaneseq
        %v550 = vshrl.u32 %v549, 7
        %v551 = vsub.s32 0, %v550
        %v552 = vrot.slane %v547, %v551
        %v554 = vadd.f32 %v540, %v552
        %v555 = vadd.f32 %v542, %v552
        %v556 = vadd.f32 %v544, %v552
        %v557 = vadd.f32 %v546, %v552
        %vm558 = vcmask 7168
        %559 = vst.msk [vmem:[%s297] sm:$0xff] %vm558, %v554
        %560 = vst.msk [vmem:[%s297 + $0x8] sm:$0xff] %vm558, %v555
        %561 = vst.msk [vmem:[%s297 + $0x10] sm:$0xff] %vm558, %v556
        %562 = vst.msk [vmem:[%s297 + $0x18] sm:$0xff] %vm558, %v557
        %s563 = smul.u32 4, %s21
        %p564 = scmp.lt.s32.totalorder %s563, 7
        %s565 = scalar_select %p564, %s563, 7
        %s566 = smul.addr %s565, 8
        %s567 = scalar_lea.vmem %s7, %s566
        // Predicated region
        $region53: #{tpu_custom_call.1} parent=47 // pred_check
          %p568 = pneg %p191
        $region54: #{tpu_custom_call.1} parent=47 // pred_check_branch
          %570 = sbr.rel (%p568) target = $region56
        $region55: #{tpu_custom_call.1} parent=47 // pred_region
          %s571 = smul.u32 4, %s21
        $region56: #{tpu_custom_call.1} parent=47 // pred_fallthru
          _
      $region48: #{tpu_custom_call.1} parent=5 // pred_fallthru
        _
      %p572 = scmp.le.s32.totalorder 2, %s16
      // Predicated region
      $region57: #{tpu_custom_call.1} parent=5 // pred_check
        %p573 = pneg %p572
      $region58: #{tpu_custom_call.1} parent=5 // pred_check_branch
        %575 = sbr.rel (%p573) target = $region60
      $region59: #{tpu_custom_call.1} parent=5 // pred_region
        %s576 = ssub.s32 %s16, 2
        // Predicated region
        $region61: #{tpu_custom_call.1} parent=59 // pred_check
          %p577 = pneg %p197
        $region62: #{tpu_custom_call.1} parent=59 // pred_check_branch
          %579 = sbr.rel (%p577) target = $region64
        $region63: #{tpu_custom_call.1} parent=59 // pred_region
          %s580 = smul.u32 4, %s22
          %p581 = scmp.lt.s32.totalorder %s580, 7
          %s582 = scalar_select %p581, %s580, 7
          %s583 = smul.addr %s582, 8
          %s584 = scalar_lea.vmem %s7, %s583
        $region64: #{tpu_custom_call.1} parent=59 // pred_fallthru
          _
      $region60: #{tpu_custom_call.1} parent=5 // pred_fallthru
        _
    $region6: #{tpu_custom_call.1} parent=1 // loop_footer
      %s20 = sadd.s32 1, %s16
    $region7: #{tpu_custom_call.1} parent=1 // loop_footer_branch
      %15 = sbr.rel target = $region3
    $region8: #{tpu_custom_call.1} parent=1 // loop_exit
      _
    %585 = vsyncpa [#allocation4], 1
    %s586 = scalar_lea.sflag [#allocation4], 1
    %587 = vsyncpa %s586, 1

</llo_original>
